<compile_context>
chip_gen: v7x
topology: tpu7x:2x2x1
jax: 0.10.0
libtpu: 0.0.40
codegen_flags: <defaults>
</compile_context>

<pallas_src>
import jax
import jax.numpy as jnp
from jax.experimental import pallas as pl
from jax.experimental.pallas import tpu as pltpu


def _scalar_forward_kernel(c_ref, o_ref):
    # Pure passthrough of the scalar parameter (the entire "compute").
    o_ref[0] = c_ref[0]


@jax.jit
def scalar_forward(constant_1d: jax.Array) -> jax.Array:
    """Forward pass of `Scalar`: returns the scalar parameter.

    `constant_1d` is a (1,) float32 array (the parameter, pre-shaped at init
    time).  Returns a 0-d float32 array, matching the semantics of returning
    `nn.Parameter(torch.tensor(init_value))`.
    """
    out1d = pl.pallas_call(
        _scalar_forward_kernel,
        out_shape=jax.ShapeDtypeStruct((1,), jnp.float32),
        in_specs=[pl.BlockSpec(memory_space=pltpu.SMEM)],
        out_specs=pl.BlockSpec(memory_space=pltpu.SMEM),
        # Accurate (near-zero) cost so XLA doesn't serialize neighbors around
        # an unknown-cost custom call.
        cost_estimate=pl.CostEstimate(flops=0, transcendentals=0,
                                      bytes_accessed=8),
    )(constant_1d)
    # Pure metadata reshape to a 0-d scalar.
    return out1d.reshape(())


class ScalarPallas:
    """JAX/Pallas equivalent of the PyTorch `Scalar` module."""

    def __init__(self, init_value: float):
        # Deterministic parameter init, same value/dtype as
        # nn.Parameter(torch.tensor(init_value, dtype=torch.float32)), stored
        # pre-shaped (1,) so the per-call path does no reshaping/casting.
        self.constant = jnp.full((1,), init_value, dtype=jnp.float32)

    def __call__(self) -> jax.Array:
        return scalar_forward(self.constant)


if __name__ == "__main__":
    # The module has no forward inputs; use PRNGKey(0) only to derive a
    # reproducible init value for the parameter.
    key = jax.random.PRNGKey(0)
    init_value = float(jax.random.uniform(key, (), dtype=jnp.float32))

    module = ScalarPallas(init_value)

    out = module()
    jax.block_until_ready(out)

    # Second call exercises the cached jitted path; parameter must persist.
    out2 = module()
    jax.block_until_ready(out2)

    assert out.shape == ()
    assert out.dtype == jnp.float32
    assert jnp.allclose(out, jnp.float32(init_value))
    assert jnp.allclose(out2, jnp.float32(init_value))
    # Parameter buffer must be untouched (no donation / aliasing hazards).
    assert jnp.allclose(module.constant, jnp.float32(init_value))

    print("KERNEL_OK")
</pallas_src>

<mosaic_0001>
module attributes {stable_mosaic.version = 11 : i64} {
  func.func @_scalar_forward_kernel(%arg0: memref<1xf32, #tpu.memory_space<smem>>, %arg1: memref<1xf32, #tpu.memory_space<smem>>) attributes {dimension_semantics = [], scalar_prefetch = 0 : i64, scratch_operands = 0 : i64, tpu.core_type = #tpu.core_type<tc>} {
    %c0 = arith.constant 0 : index
    %0 = memref.load %arg0[%c0] : memref<1xf32, #tpu.memory_space<smem>>
    %c0_0 = arith.constant 0 : index
    %1 = memref.load %arg1[%c0_0] : memref<1xf32, #tpu.memory_space<smem>>
    memref.store %0, %arg1[%c0_0] : memref<1xf32, #tpu.memory_space<smem>>
    return
  }
}

</mosaic_0001>

<llo_original>
// kernel: scalar_forward.1
$region0: #{scalar_forward.1}
  #allocation0 [shape = 'u32[]', space=smem, size = 0x4, offset = 0x4, fixed_abs, tag = 'smem constant byte address 0x4 - core index']
  #allocation1 [shape = 'u32[144,128]{1,0:T(1,128)}', space=vmem, size = 0x12000, scoped, tag = 'internal scratch']
  #allocation2 [shape = 'f32[1]{0:T(128)S(6)}', space=smem, size = 0x200, scoped, tag = 'scoped memory for scalar_forward.1']
  %s0 = inlined_call_operand.<no memory space> [shape: f32[1], index: 0, kind: input, shape index: {}]
  %s1 = inlined_call_operand.hbm [shape: f32[1], index: 1, kind: output, shape index: {}]
  %s2 = sld [smem:[#allocation0]]
  $region14: #{scalar_forward.1} parent=0
    _
  %s4 = ssub.s32 1, %s2
  %s5 = scalar_select 0, %s4, %s2
  %6 = sst [smem:[#allocation2]] %s0
  $region1: #{scalar_forward.1} parent=0
    #allocation3 [shape = 'u8[512]{0}', space=smem, size = 0x200, scoped, tag = 'output window, operand 0, single buffered']
    #allocation4 [shape = 's32[1]{0}', space=sflag, size = 0x4, scoped, tag = 'scoped memory for scalar_forward.1']
    %7 = vsyncpa [#allocation4], 0
    // Predicated region
    $region2: #{scalar_forward.1} parent=1 // pred_check
      _
    $region3: #{scalar_forward.1} parent=1 // pred_check_branch
      %9 = sbr.rel (0) target = $region5
    $region4: #{scalar_forward.1} parent=1 // pred_region
      _
    $region5: #{scalar_forward.1} parent=1 // pred_fallthru
      _
    %s10 = sld [smem:[#allocation2]]
    %s11 = scalar_lea.smem [#allocation3], 0
    %12 = sst [smem:[%s11]] %s10
    // Predicated region
    $region6: #{scalar_forward.1} parent=1 // pred_check
      _
    $region7: #{scalar_forward.1} parent=1 // pred_check_branch
      %14 = sbr.rel (0) target = $region9
    $region8: #{scalar_forward.1} parent=1 // pred_region
      %s16 = ssub.s32 16, 16
      %17 = vsyncadd [#allocation4], %s16
      %20 = dma.smem_to_hbm [#allocation3], 16, %s1, [#allocation4]
    $region9: #{scalar_forward.1} parent=1 // pred_fallthru
      _
    // Predicated region
    $region10: #{scalar_forward.1} parent=1 // pred_check
      _
    $region11: #{scalar_forward.1} parent=1 // pred_check_branch
      %22 = sbr.rel (0) target = $region13
    $region12: #{scalar_forward.1} parent=1 // pred_region
      %23 = dma.done [#allocation4], 16
    $region13: #{scalar_forward.1} parent=1 // pred_fallthru
      _
    %24 = sfence
    %25 = vsyncpa [#allocation4], 1

</llo_original>
